<compile_context>
chip_gen: v7x
topology: tpu7x:2x2x1
jax: 0.10.0
libtpu: 0.0.40
codegen_flags: <defaults>
</compile_context>

<pallas_src>
import jax
import jax.numpy as jnp
from jax.experimental import pallas as pl
from jax.experimental.pallas import tpu as pltpu


def mlp_kernel(x_ref, w1_ref, b1_ref, w2_ref, b2_ref, w3_ref, b3_ref, o_ref):
    # x_ref: [D_in, tile_b] bf16 ; w*: [out, in] bf16 ; b*: [out, 1] f32
    x = x_ref[...]
    # fc1 + relu
    h1 = jnp.dot(w1_ref[...], x, preferred_element_type=jnp.float32)      # [H1, tile_b] f32
    h1 = jnp.maximum(h1 + b1_ref[...], 0.0)
    # fc2 + relu
    h2 = jnp.dot(w2_ref[...], h1.astype(w2_ref.dtype),
                 preferred_element_type=jnp.float32)                      # [H2, tile_b] f32
    h2 = jnp.maximum(h2 + b2_ref[...], 0.0)
    # fc3 (no activation)
    out = jnp.dot(w3_ref[...], h2.astype(w3_ref.dtype),
                  preferred_element_type=jnp.float32)                     # [D_out, tile_b] f32
    o_ref[...] = (out + b3_ref[...]).astype(o_ref.dtype)                  # lane-dense store


def _pick_tile_b(B):
    """Largest lane-aligned (multiple of 128) batch tile that still yields >= 2
    grid steps, so the x-tile DMA double-buffers against compute and both
    v7x TensorCores get work. Falls back to the whole batch for tiny B."""
    for cand in (8192, 4096, 2048, 1024, 512, 256, 128):
        if B % cand == 0 and B // cand >= 2:
            return cand
    return B


def linear_regression_model(x, params, *, tile_b=None, compute_dtype=jnp.bfloat16):
    """Forward pass of LinearRegressionModel (x: [B, D_in]) -> [B, 1].

    params: weights in PyTorch layout [out, in], biases [out, 1].
    """
    B, D_in = x.shape
    w1, b1 = params["w1"], params["b1"]
    w2, b2 = params["w2"], params["b2"]
    w3, b3 = params["w3"], params["b3"]
    H1, H2, D_out = w1.shape[0], w2.shape[0], w3.shape[0]
    assert w1.shape == (H1, D_in) and w2.shape == (H2, H1) and w3.shape == (D_out, H2)

    if tile_b is None:
        tile_b = _pick_tile_b(B)
    assert B % tile_b == 0, "tile_b must divide batch"
    assert tile_b % 128 == 0 or tile_b == B, (
        "tile_b must be a multiple of 128 (lane axis) or equal the full batch")

    # bf16 MXU operands halve HBM traffic on x; biases stay f32 (f32 epilogue).
    x_t = x.T.astype(compute_dtype)          # [D_in, B]  (batch on the lane axis)
    w1c = w1.astype(compute_dtype)
    w2c = w2.astype(compute_dtype)
    w3c = w3.astype(compute_dtype)
    b1f = b1.astype(jnp.float32)
    b2f = b2.astype(jnp.float32)
    b3f = b3.astype(jnp.float32)

    grid = (B // tile_b,)
    out_t = pl.pallas_call(
        mlp_kernel,
        out_shape=jax.ShapeDtypeStruct((D_out, B), jnp.float32),
        grid_spec=pltpu.PrefetchScalarGridSpec(
            num_scalar_prefetch=0,
            grid=grid,
            in_specs=[
                pl.BlockSpec((D_in, tile_b), lambda i: (0, i)),   # x tile over batch (lanes)
                pl.BlockSpec((H1, D_in), lambda i: (0, 0)),       # w1 (VMEM-resident)
                pl.BlockSpec((H1, 1), lambda i: (0, 0)),          # b1
                pl.BlockSpec((H2, H1), lambda i: (0, 0)),         # w2
                pl.BlockSpec((H2, 1), lambda i: (0, 0)),          # b2
                pl.BlockSpec((D_out, H2), lambda i: (0, 0)),      # w3
                pl.BlockSpec((D_out, 1), lambda i: (0, 0)),       # b3
            ],
            out_specs=pl.BlockSpec((D_out, tile_b), lambda i: (0, i)),
        ),
        compiler_params=pltpu.CompilerParams(
            dimension_semantics=("parallel",),   # batch tiles are independent
        ),
    )(x_t, w1c, b1f, w2c, b2f, w3c, b3f)

    # Transpose back to the PyTorch output layout [B, 1] (cheap layout plumbing).
    return out_t.T.astype(x.dtype)


def init_params(key, input_dim):
    """Deterministic init mimicking nn.Linear defaults (uniform +-1/sqrt(fan_in)).
    Weights stored in PyTorch layout [out, in]; biases [out, 1]."""
    dims = [(input_dim, 32), (32, 16), (16, 1)]
    params = {}
    for idx, (fan_in, fan_out) in enumerate(dims, start=1):
        key, kw, kb = jax.random.split(key, 3)
        bound = 1.0 / jnp.sqrt(fan_in)
        params[f"w{idx}"] = jax.random.uniform(
            kw, (fan_out, fan_in), jnp.float32, -bound, bound)
        params[f"b{idx}"] = jax.random.uniform(
            kb, (fan_out, 1), jnp.float32, -bound, bound)
    return params


def reference_forward(x, params, compute_dtype=jnp.bfloat16):
    """Pure-JAX reference matching the kernel's arithmetic (bf16 operands, f32 acc)."""
    xt = x.T.astype(compute_dtype)
    h = jnp.dot(params["w1"].astype(compute_dtype), xt,
                preferred_element_type=jnp.float32)
    h = jnp.maximum(h + params["b1"], 0.0)
    h = jnp.dot(params["w2"].astype(compute_dtype), h.astype(compute_dtype),
                preferred_element_type=jnp.float32)
    h = jnp.maximum(h + params["b2"], 0.0)
    out = jnp.dot(params["w3"].astype(compute_dtype), h.astype(compute_dtype),
                  preferred_element_type=jnp.float32)
    return (out + params["b3"]).T


if __name__ == "__main__":
    key = jax.random.PRNGKey(0)
    k_param, k_x = jax.random.split(key)

    batch, input_dim = 512, 16   # small, but tile_b=256 -> grid=(2,) exercises pipelining
    params = init_params(k_param, input_dim)
    x = jax.random.normal(k_x, (batch, input_dim), dtype=jnp.float32)

    out = linear_regression_model(x, params)
    out = jax.block_until_ready(out)

    ref = reference_forward(x, params)
    assert out.shape == (batch, 1)
    assert jnp.allclose(out, ref, atol=1e-4, rtol=1e-4), "mismatch vs reference"
    print("KERNEL_OK")
</pallas_src>

<mosaic_0001>
module attributes {stable_mosaic.version = 11 : i64} {
  func.func @mlp_kernel(%arg0: i32, %arg1: memref<16x256xbf16, #tpu.memory_space<vmem>>, %arg2: memref<32x16xbf16, #tpu.memory_space<vmem>>, %arg3: memref<32x1xf32, #tpu.memory_space<vmem>>, %arg4: memref<16x32xbf16, #tpu.memory_space<vmem>>, %arg5: memref<16x1xf32, #tpu.memory_space<vmem>>, %arg6: memref<1x16xbf16, #tpu.memory_space<vmem>>, %arg7: memref<1x1xf32, #tpu.memory_space<vmem>>, %arg8: memref<1x256xf32, #tpu.memory_space<vmem>>) attributes {dimension_semantics = [#tpu.dimension_semantics<parallel>], iteration_bounds = array<i64: 2>, scalar_prefetch = 0 : i64, scratch_operands = 0 : i64, tpu.core_type = #tpu.core_type<tc>, window_params = [{transform_indices = @transform_0, window_bounds = array<i64: 16, 256>}, {pipeline_mode = #tpu.pipeline_mode<synchronous>, transform_indices = @transform_1, window_bounds = array<i64: 32, 16>}, {pipeline_mode = #tpu.pipeline_mode<synchronous>, transform_indices = @transform_2, window_bounds = array<i64: 32, 1>}, {pipeline_mode = #tpu.pipeline_mode<synchronous>, transform_indices = @transform_3, window_bounds = array<i64: 16, 32>}, {pipeline_mode = #tpu.pipeline_mode<synchronous>, transform_indices = @transform_4, window_bounds = array<i64: 16, 1>}, {pipeline_mode = #tpu.pipeline_mode<synchronous>, transform_indices = @transform_5, window_bounds = array<i64: 1, 16>}, {pipeline_mode = #tpu.pipeline_mode<synchronous>, transform_indices = @transform_6, window_bounds = array<i64: 1, 1>}, {transform_indices = @transform_7, window_bounds = array<i64: 1, 256>}]} {
    %c0 = arith.constant 0 : index
    %c0_0 = arith.constant 0 : index
    %0 = vector.load %arg1[%c0, %c0_0] : memref<16x256xbf16, #tpu.memory_space<vmem>>, vector<16x256xbf16>
    %c0_1 = arith.constant 0 : index
    %c0_2 = arith.constant 0 : index
    %1 = vector.load %arg2[%c0_1, %c0_2] : memref<32x16xbf16, #tpu.memory_space<vmem>>, vector<32x16xbf16>
    %cst = arith.constant dense<0.000000e+00> : vector<32x256xf32>
    %2 = tpu.matmul %1, %0, %cst {dimension_numbers = #tpu.dot_dimension_numbers<[1], [0], [0], [1], [0, 0, 1, 1], [], []>} : vector<32x16xbf16>, vector<16x256xbf16>, vector<32x256xf32> -> vector<32x256xf32>
    %c0_3 = arith.constant 0 : index
    %c0_4 = arith.constant 0 : index
    %3 = vector.load %arg3[%c0_3, %c0_4] : memref<32x1xf32, #tpu.memory_space<vmem>>, vector<32x1xf32>
    %4 = vector.broadcast %3 : vector<32x1xf32> to vector<32x256xf32>
    %5 = arith.addf %2, %4 : vector<32x256xf32>
    %cst_5 = arith.constant 0.000000e+00 : f32
    %6 = vector.broadcast %cst_5 : f32 to vector<32x256xf32>
    %7 = arith.maximumf %5, %6 : vector<32x256xf32>
    %c0_6 = arith.constant 0 : index
    %c0_7 = arith.constant 0 : index
    %8 = vector.load %arg4[%c0_6, %c0_7] : memref<16x32xbf16, #tpu.memory_space<vmem>>, vector<16x32xbf16>
    %9 = arith.truncf %7 : vector<32x256xf32> to vector<32x256xbf16>
    %cst_8 = arith.constant dense<0.000000e+00> : vector<16x256xf32>
    %10 = tpu.matmul %8, %9, %cst_8 {dimension_numbers = #tpu.dot_dimension_numbers<[1], [0], [0], [1], [0, 0, 1, 1], [], []>} : vector<16x32xbf16>, vector<32x256xbf16>, vector<16x256xf32> -> vector<16x256xf32>
    %c0_9 = arith.constant 0 : index
    %c0_10 = arith.constant 0 : index
    %11 = vector.load %arg5[%c0_9, %c0_10] : memref<16x1xf32, #tpu.memory_space<vmem>>, vector<16x1xf32>
    %12 = vector.broadcast %11 : vector<16x1xf32> to vector<16x256xf32>
    %13 = arith.addf %10, %12 : vector<16x256xf32>
    %cst_11 = arith.constant 0.000000e+00 : f32
    %14 = vector.broadcast %cst_11 : f32 to vector<16x256xf32>
    %15 = arith.maximumf %13, %14 : vector<16x256xf32>
    %c0_12 = arith.constant 0 : index
    %c0_13 = arith.constant 0 : index
    %16 = vector.load %arg6[%c0_12, %c0_13] : memref<1x16xbf16, #tpu.memory_space<vmem>>, vector<1x16xbf16>
    %17 = arith.truncf %15 : vector<16x256xf32> to vector<16x256xbf16>
    %cst_14 = arith.constant dense<0.000000e+00> : vector<1x256xf32>
    %18 = tpu.matmul %16, %17, %cst_14 {dimension_numbers = #tpu.dot_dimension_numbers<[1], [0], [0], [1], [0, 0, 1, 1], [], []>} : vector<1x16xbf16>, vector<16x256xbf16>, vector<1x256xf32> -> vector<1x256xf32>
    %c0_15 = arith.constant 0 : index
    %c0_16 = arith.constant 0 : index
    %19 = vector.load %arg7[%c0_15, %c0_16] : memref<1x1xf32, #tpu.memory_space<vmem>>, vector<1x1xf32>
    %20 = vector.broadcast %19 : vector<1x1xf32> to vector<1x256xf32>
    %21 = arith.addf %18, %20 : vector<1x256xf32>
    %c0_17 = arith.constant 0 : index
    %c0_18 = arith.constant 0 : index
    %22 = vector.load %arg8[%c0_17, %c0_18] : memref<1x256xf32, #tpu.memory_space<vmem>>, vector<1x256xf32>
    tpu.vector_store %arg8[%c0_17, %c0_18], %21 {strides = array<i32>} : memref<1x256xf32, #tpu.memory_space<vmem>>, vector<1x256xf32>,
    return
  }
  func.func @transform_0(%arg0: i32) -> (i32, i32) {
    %c0_i32 = arith.constant 0 : i32
    %c0_i32_0 = arith.constant 0 : i32
    return %c0_i32, %arg0 : i32, i32
  }
  func.func @transform_1(%arg0: i32) -> (i32, i32) {
    %c0_i32 = arith.constant 0 : i32
    %c0_i32_0 = arith.constant 0 : i32
    %c0_i32_1 = arith.constant 0 : i32
    return %c0_i32, %c0_i32_0 : i32, i32
  }
  func.func @transform_2(%arg0: i32) -> (i32, i32) {
    %c0_i32 = arith.constant 0 : i32
    %c0_i32_0 = arith.constant 0 : i32
    %c0_i32_1 = arith.constant 0 : i32
    return %c0_i32, %c0_i32_0 : i32, i32
  }
  func.func @transform_3(%arg0: i32) -> (i32, i32) {
    %c0_i32 = arith.constant 0 : i32
    %c0_i32_0 = arith.constant 0 : i32
    %c0_i32_1 = arith.constant 0 : i32
    return %c0_i32, %c0_i32_0 : i32, i32
  }
  func.func @transform_4(%arg0: i32) -> (i32, i32) {
    %c0_i32 = arith.constant 0 : i32
    %c0_i32_0 = arith.constant 0 : i32
    %c0_i32_1 = arith.constant 0 : i32
    return %c0_i32, %c0_i32_0 : i32, i32
  }
  func.func @transform_5(%arg0: i32) -> (i32, i32) {
    %c0_i32 = arith.constant 0 : i32
    %c0_i32_0 = arith.constant 0 : i32
    %c0_i32_1 = arith.constant 0 : i32
    return %c0_i32, %c0_i32_0 : i32, i32
  }
  func.func @transform_6(%arg0: i32) -> (i32, i32) {
    %c0_i32 = arith.constant 0 : i32
    %c0_i32_0 = arith.constant 0 : i32
    %c0_i32_1 = arith.constant 0 : i32
    return %c0_i32, %c0_i32_0 : i32, i32
  }
  func.func @transform_7(%arg0: i32) -> (i32, i32) {
    %c0_i32 = arith.constant 0 : i32
    %c0_i32_0 = arith.constant 0 : i32
    return %c0_i32, %arg0 : i32, i32
  }
}

</mosaic_0001>

<llo_original>
// kernel: tpu_custom_call.1
$region0: #{tpu_custom_call.1}
  #allocation0 [shape = 'u32[]', space=smem, size = 0x4, offset = 0x4, fixed_abs, tag = 'smem constant byte address 0x4 - core index']
  #allocation1 [shape = 'u32[144,128]{1,0:T(1,128)}', space=vmem, size = 0x12000, scoped, tag = 'internal scratch']
  #allocation2 [shape = 'f32[1,1]{1,0:T(1,128)S(1)}', space=vmem, size = 0x200, scoped, tag = 'scoped memory for tpu_custom_call.1']
  %s0 = inlined_call_operand.vmem [shape: bf16[16,512], index: 0, kind: input, shape index: {}]
  %s1 = inlined_call_operand.vmem [shape: bf16[32,16], index: 1, kind: input, shape index: {}]
  %s2 = inlined_call_operand.vmem [shape: f32[32,1], index: 2, kind: input, shape index: {}]
  %s3 = inlined_call_operand.vmem [shape: bf16[16,32], index: 3, kind: input, shape index: {}]
  %s4 = inlined_call_operand.vmem [shape: f32[16,1], index: 4, kind: input, shape index: {}]
  %s5 = inlined_call_operand.vmem [shape: bf16[1,16], index: 5, kind: input, shape index: {}]
  %s6 = inlined_call_operand.<no memory space> [shape: f32[1,1], index: 6, kind: input, shape index: {}]
  %s7 = inlined_call_operand.hbm [shape: f32[1,512], index: 7, kind: output, shape index: {}]
  %s8 = sld [smem:[#allocation0]]
  $region99: #{tpu_custom_call.1} parent=0
    _
  %s10 = ssub.s32 1, %s8
  %s11 = scalar_select 0, %s10, %s8
  %v12 = vstv %s6
  %13 = vst [vmem:[#allocation2] sm:$0x1] %v12
  $region1: #{tpu_custom_call.1} parent=0
    #allocation3 [shape = 'u8[16384]{0}', space=vmem, size = 0x4000, scoped, tag = 'input window, operand 0']
    #allocation4 [shape = 'u8[2048]{0}', space=vmem, size = 0x800, scoped, tag = 'output window, operand 0']
    #allocation5 [shape = 's32[2]{0}', space=sflag, size = 0x8, scoped, tag = 'scoped memory for tpu_custom_call.1']
    %14 = vsyncpa [#allocation5], 0
    %s15 = scalar_lea.sflag [#allocation5], 1
    %16 = vsyncpa %s15, 0
    loop: start=0, step=1, limit=4
    $region2: #{tpu_custom_call.1} parent=1 // loop_pre_header
      _
    $region3: #{tpu_custom_call.1} parent=1 // loop_header
      %s18 = sphi 0, %s22
      %p19 = scmp.ge.s32.totalorder %s18, 4
      %s28 = sphi 0, %s30
      %s31 = sphi 0, %s28
      %s32 = sphi 0, %s31
      %s48 = sphi 0, %s32
      %s52 = sphi 0, %s52
      %s54 = sphi 0, %s52
      %s55 = sphi 0, %s54
      %s69 = sphi 0, %s55
      %s73 = sphi 0, %s73
      %s75 = sphi 0, %s73
      %s76 = sphi 0, %s75
      %s90 = sphi 0, %s76
      %s94 = sphi 0, %s94
      %s96 = sphi 0, %s94
      %s97 = sphi 0, %s96
      %s111 = sphi 0, %s97
      %s115 = sphi 0, %s115
      %s117 = sphi 0, %s115
      %s118 = sphi 0, %s117
      %s132 = sphi 0, %s118
      %s136 = sphi 0, %s136
      %s138 = sphi 0, %s136
      %s139 = sphi 0, %s138
      %s153 = sphi 0, %s139
      %s157 = sphi 0, %s157
      %s159 = sphi 0, %s157
      %s160 = sphi 0, %s159
      %s174 = sphi 0, %s160
      %s180 = sphi 0, %s182
      %s183 = sphi 0, %s180
      %s184 = sphi 0, %s183
      %s200 = sphi 0, %s184
    $region4: #{tpu_custom_call.1} parent=1 // loop_header_branch
      %21 = sbr.rel (%p19) target = $region8
    $region5: #{tpu_custom_call.1} parent=1 // loop_body
      %s23 = ssub.s32 %s18, 1
      %s24 = ssub.s32 %s18, 2
      %s25 = sadd.s32 %s18, 1
      %s26 = ssub.s32 %s18, %s25
      %p27 = scmp.eq.s32.totalorder %s26, 0
      %s29 = sadd.s32 %s28, 1
      %s30 = scalar_select %p27, %s28, %s29
      %p33 = pneg %p27
      %p34 = scmp.eq.s32.totalorder %s18, 1
      %p35 = por %p33, %p34
      %p36 = scmp.ne.s32.totalorder %s28, %s31
      %p37 = scmp.eq.s32.totalorder %s18, 0
      %p38 = por %p36, %p37
      %p39 = scmp.ne.s32.totalorder %s28, %s31
      %p40 = scmp.eq.s32.totalorder %s23, 1
      %p41 = por %p39, %p40
      %p42 = scmp.ne.s32.totalorder %s31, %s32
      %p43 = scmp.eq.s32.totalorder %s23, 0
      %p44 = por %p42, %p43
      %p45 = scmp.ne.s32.totalorder %s31, %s32
      %p46 = scmp.eq.s32.totalorder %s24, 1
      %p47 = por %p45, %p46
      %p49 = scmp.ne.s32.totalorder %s32, %s48
      %p50 = scmp.eq.s32.totalorder %s24, 0
      %p51 = por %p49, %p50
      %s53 = sadd.s32 %s52, 1
      %p56 = scmp.eq.s32.totalorder %s18, 1
      %p57 = scmp.ne.s32.totalorder %s52, %s54
      %p58 = scmp.eq.s32.totalorder %s18, 0
      %p59 = por %p57, %p58
      %p60 = scmp.ne.s32.totalorder %s52, %s54
      %p61 = scmp.eq.s32.totalorder %s23, 1
      %p62 = por %p60, %p61
      %p63 = scmp.ne.s32.totalorder %s54, %s55
      %p64 = scmp.eq.s32.totalorder %s23, 0
      %p65 = por %p63, %p64
      %p66 = scmp.ne.s32.totalorder %s54, %s55
      %p67 = scmp.eq.s32.totalorder %s24, 1
      %p68 = por %p66, %p67
      %p70 = scmp.ne.s32.totalorder %s55, %s69
      %p71 = scmp.eq.s32.totalorder %s24, 0
      %p72 = por %p70, %p71
      %s74 = sadd.s32 %s73, 1
      %p77 = scmp.eq.s32.totalorder %s18, 1
      %p78 = scmp.ne.s32.totalorder %s73, %s75
      %p79 = scmp.eq.s32.totalorder %s18, 0
      %p80 = por %p78, %p79
      %p81 = scmp.ne.s32.totalorder %s73, %s75
      %p82 = scmp.eq.s32.totalorder %s23, 1
      %p83 = por %p81, %p82
      %p84 = scmp.ne.s32.totalorder %s75, %s76
      %p85 = scmp.eq.s32.totalorder %s23, 0
      %p86 = por %p84, %p85
      %p87 = scmp.ne.s32.totalorder %s75, %s76
      %p88 = scmp.eq.s32.totalorder %s24, 1
      %p89 = por %p87, %p88
      %p91 = scmp.ne.s32.totalorder %s76, %s90
      %p92 = scmp.eq.s32.totalorder %s24, 0
      %p93 = por %p91, %p92
      %s95 = sadd.s32 %s94, 1
      %p98 = scmp.eq.s32.totalorder %s18, 1
      %p99 = scmp.ne.s32.totalorder %s94, %s96
      %p100 = scmp.eq.s32.totalorder %s18, 0
      %p101 = por %p99, %p100
      %p102 = scmp.ne.s32.totalorder %s94, %s96
      %p103 = scmp.eq.s32.totalorder %s23, 1
      %p104 = por %p102, %p103
      %p105 = scmp.ne.s32.totalorder %s96, %s97
      %p106 = scmp.eq.s32.totalorder %s23, 0
      %p107 = por %p105, %p106
      %p108 = scmp.ne.s32.totalorder %s96, %s97
      %p109 = scmp.eq.s32.totalorder %s24, 1
      %p110 = por %p108, %p109
      %p112 = scmp.ne.s32.totalorder %s97, %s111
      %p113 = scmp.eq.s32.totalorder %s24, 0
      %p114 = por %p112, %p113
      %s116 = sadd.s32 %s115, 1
      %p119 = scmp.eq.s32.totalorder %s18, 1
      %p120 = scmp.ne.s32.totalorder %s115, %s117
      %p121 = scmp.eq.s32.totalorder %s18, 0
      %p122 = por %p120, %p121
      %p123 = scmp.ne.s32.totalorder %s115, %s117
      %p124 = scmp.eq.s32.totalorder %s23, 1
      %p125 = por %p123, %p124
      %p126 = scmp.ne.s32.totalorder %s117, %s118
      %p127 = scmp.eq.s32.totalorder %s23, 0
      %p128 = por %p126, %p127
      %p129 = scmp.ne.s32.totalorder %s117, %s118
      %p130 = scmp.eq.s32.totalorder %s24, 1
      %p131 = por %p129, %p130
      %p133 = scmp.ne.s32.totalorder %s118, %s132
      %p134 = scmp.eq.s32.totalorder %s24, 0
      %p135 = por %p133, %p134
      %s137 = sadd.s32 %s136, 1
      %p140 = scmp.eq.s32.totalorder %s18, 1
      %p141 = scmp.ne.s32.totalorder %s136, %s138
      %p142 = scmp.eq.s32.totalorder %s18, 0
      %p143 = por %p141, %p142
      %p144 = scmp.ne.s32.totalorder %s136, %s138
      %p145 = scmp.eq.s32.totalorder %s23, 1
      %p146 = por %p144, %p145
      %p147 = scmp.ne.s32.totalorder %s138, %s139
      %p148 = scmp.eq.s32.totalorder %s23, 0
      %p149 = por %p147, %p148
      %p150 = scmp.ne.s32.totalorder %s138, %s139
      %p151 = scmp.eq.s32.totalorder %s24, 1
      %p152 = por %p150, %p151
      %p154 = scmp.ne.s32.totalorder %s139, %s153
      %p155 = scmp.eq.s32.totalorder %s24, 0
      %p156 = por %p154, %p155
      %s158 = sadd.s32 %s157, 1
      %p161 = scmp.eq.s32.totalorder %s18, 1
      %p162 = scmp.ne.s32.totalorder %s157, %s159
      %p163 = scmp.eq.s32.totalorder %s18, 0
      %p164 = por %p162, %p163
      %p165 = scmp.ne.s32.totalorder %s157, %s159
      %p166 = scmp.eq.s32.totalorder %s23, 1
      %p167 = por %p165, %p166
      %p168 = scmp.ne.s32.totalorder %s159, %s160
      %p169 = scmp.eq.s32.totalorder %s23, 0
      %p170 = por %p168, %p169
      %p171 = scmp.ne.s32.totalorder %s159, %s160
      %p172 = scmp.eq.s32.totalorder %s24, 1
      %p173 = por %p171, %p172
      %p175 = scmp.ne.s32.totalorder %s160, %s174
      %p176 = scmp.eq.s32.totalorder %s24, 0
      %p177 = por %p175, %p176
      %s178 = ssub.s32 %s18, %s25
      %p179 = scmp.eq.s32.totalorder %s178, 0
      %s181 = sadd.s32 %s180, 1
      %s182 = scalar_select %p179, %s180, %s181
      %p185 = pneg %p179
      %p186 = scmp.eq.s32.totalorder %s18, 1
      %p187 = por %p185, %p186
      %p188 = scmp.ne.s32.totalorder %s180, %s183
      %p189 = scmp.eq.s32.totalorder %s18, 0
      %p190 = por %p188, %p189
      %p191 = scmp.ne.s32.totalorder %s180, %s183
      %p192 = scmp.eq.s32.totalorder %s23, 1
      %p193 = por %p191, %p192
      %p194 = scmp.ne.s32.totalorder %s183, %s184
      %p195 = scmp.eq.s32.totalorder %s23, 0
      %p196 = por %p194, %p195
      %p197 = scmp.ne.s32.totalorder %s183, %s184
      %p198 = scmp.eq.s32.totalorder %s24, 1
      %p199 = por %p197, %p198
      %p201 = scmp.ne.s32.totalorder %s184, %s200
      %p202 = scmp.eq.s32.totalorder %s24, 0
      %p203 = por %p201, %p202
      %p204 = scmp.le.s32.totalorder 1, %s18
      %p205 = scmp.lt.s32.totalorder %s18, 3
      %p206 = pnand %p204, %p205
      %p207 = pneg %p206
      // Predicated region
      $region9: #{tpu_custom_call.1} parent=5 // pred_check
        _
      $region10: #{tpu_custom_call.1} parent=5 // pred_check_branch
        %209 = sbr.rel (%p206) target = $region12
      $region11: #{tpu_custom_call.1} parent=5 // pred_region
        %s210 = ssub.s32 %s18, 1
        // Predicated region
        $region13: #{tpu_custom_call.1} parent=11 // pred_check
          %p211 = pneg %p65
        $region14: #{tpu_custom_call.1} parent=11 // pred_check_branch
          %213 = sbr.rel (%p211) target = $region16
        $region15: #{tpu_custom_call.1} parent=11 // pred_region
          _
        $region16: #{tpu_custom_call.1} parent=11 // pred_fallthru
          _
        // Predicated region
        $region17: #{tpu_custom_call.1} parent=11 // pred_check
          %p214 = pneg %p86
        $region18: #{tpu_custom_call.1} parent=11 // pred_check_branch
          %216 = sbr.rel (%p214) target = $region20
        $region19: #{tpu_custom_call.1} parent=11 // pred_region
          _
        $region20: #{tpu_custom_call.1} parent=11 // pred_fallthru
          _
        // Predicated region
        $region21: #{tpu_custom_call.1} parent=11 // pred_check
          %p217 = pneg %p107
        $region22: #{tpu_custom_call.1} parent=11 // pred_check_branch
          %219 = sbr.rel (%p217) target = $region24
        $region23: #{tpu_custom_call.1} parent=11 // pred_region
          _
        $region24: #{tpu_custom_call.1} parent=11 // pred_fallthru
          _
        // Predicated region
        $region25: #{tpu_custom_call.1} parent=11 // pred_check
          %p220 = pneg %p128
        $region26: #{tpu_custom_call.1} parent=11 // pred_check_branch
          %222 = sbr.rel (%p220) target = $region28
        $region27: #{tpu_custom_call.1} parent=11 // pred_region
          _
        $region28: #{tpu_custom_call.1} parent=11 // pred_fallthru
          _
        // Predicated region
        $region29: #{tpu_custom_call.1} parent=11 // pred_check
          %p223 = pneg %p149
        $region30: #{tpu_custom_call.1} parent=11 // pred_check_branch
          %225 = sbr.rel (%p223) target = $region32
        $region31: #{tpu_custom_call.1} parent=11 // pred_region
          _
        $region32: #{tpu_custom_call.1} parent=11 // pred_fallthru
          _
        // Predicated region
        $region33: #{tpu_custom_call.1} parent=11 // pred_check
          %p226 = pneg %p170
        $region34: #{tpu_custom_call.1} parent=11 // pred_check_branch
          %228 = sbr.rel (%p226) target = $region36
        $region35: #{tpu_custom_call.1} parent=11 // pred_region
          _
        $region36: #{tpu_custom_call.1} parent=11 // pred_fallthru
          _
      $region12: #{tpu_custom_call.1} parent=5 // pred_fallthru
        _
      %p229 = scmp.lt.s32.totalorder %s18, 2
      // Predicated region
      $region37: #{tpu_custom_call.1} parent=5 // pred_check
        %p230 = pneg %p229
      $region38: #{tpu_custom_call.1} parent=5 // pred_check_branch
        %232 = sbr.rel (%p230) target = $region40
      $region39: #{tpu_custom_call.1} parent=5 // pred_region
        // Predicated region
        $region41: #{tpu_custom_call.1} parent=39 // pred_check
          %p233 = pneg %p38
        $region42: #{tpu_custom_call.1} parent=39 // pred_check_branch
          %235 = sbr.rel (%p233) target = $region44
        $region43: #{tpu_custom_call.1} parent=39 // pred_region
          %s236 = sand.u32 %s28, 1
          %s237 = sand.u32 %s28, 1
          %s238 = smul.addr %s237, 16
          %s239 = scalar_lea.vmem [#allocation3], %s238
          %s240 = smul.u32 2, %s18
          %s241 = smul.addr %s240, 4
          %s242 = scalar_lea.vmem %s0, %s241
          // Predicated region
          $region45: #{tpu_custom_call.1} parent=43 // pred_check
            _
          $region46: #{tpu_custom_call.1} parent=43 // pred_check_branch
            %244 = sbr.rel (0) target = $region48
          $region47: #{tpu_custom_call.1} parent=43 // pred_region
            // Predicated region
            $region49: #{tpu_custom_call.1} parent=47 // pred_check
              _
            $region50: #{tpu_custom_call.1} parent=47 // pred_check_branch
              %246 = sbr.rel (0) target = $region52
            $region51: #{tpu_custom_call.1} parent=47 // pred_region
              // Predicated region
              $region64: #{tpu_custom_call.1} parent=51 // pred_check
                _
              $region65: #{tpu_custom_call.1} parent=51 // pred_check_branch
                %263 = sbr.rel (0) target = $region67
              $region66: #{tpu_custom_call.1} parent=51 // pred_region
                loop: start=0, step=1, limit=1
                $region68: #{tpu_custom_call.1} parent=66 // loop_pre_header
                  _
                $region69: #{tpu_custom_call.1} parent=66 // loop_header
                  %s265 = sphi 0, %s269
                  %p266 = scmp.ge.s32.totalorder %s265, 1
                  %s270 = sphi %s242, %s242
                  %s271 = sphi %s239, %s239
                $region70: #{tpu_custom_call.1} parent=66 // loop_header_branch
                  %268 = sbr.rel (%p266) target = $region74
                $region71: #{tpu_custom_call.1} parent=66 // loop_body
                  %v272 = vld [vmem:[%s270] sm:$0xff]
                  %273 = vst [vmem:[%s271] sm:$0xff] %v272
                  %v274 = vld [vmem:[%s270 + $0x10] sm:$0xff]
                  %275 = vst [vmem:[%s271 + $0x8] sm:$0xff] %v274
                $region72: #{tpu_custom_call.1} parent=66 // loop_footer
                  %s269 = sadd.s32 1, %s265
                $region73: #{tpu_custom_call.1} parent=66 // loop_footer_branch
                  %264 = sbr.rel target = $region69
                $region74: #{tpu_custom_call.1} parent=66 // loop_exit
                  _
              $region67: #{tpu_custom_call.1} parent=51 // pred_fallthru
                _
              // Predicated region
              $region75: #{tpu_custom_call.1} parent=51 // pred_check
                _
              $region76: #{tpu_custom_call.1} parent=51 // pred_check_branch
                %277 = sbr.rel target = $region78
              $region77: #{tpu_custom_call.1} parent=51 // pred_region
                _
              $region78: #{tpu_custom_call.1} parent=51 // pred_fallthru
                _
            $region52: #{tpu_custom_call.1} parent=47 // pred_fallthru
              _
            // Predicated region
            $region53: #{tpu_custom_call.1} parent=47 // pred_check
              _
            $region54: #{tpu_custom_call.1} parent=47 // pred_check_branch
              %248 = sbr.rel target = $region56
            $region55: #{tpu_custom_call.1} parent=47 // pred_region
              loop: start=0, step=1, limit=1
              $region57: #{tpu_custom_call.1} parent=55 // loop_pre_header
                _
              $region58: #{tpu_custom_call.1} parent=55 // loop_header
                %s251 = sphi 0, %s255
                %p252 = scmp.ge.s32.totalorder %s251, 1
                %s256 = sphi %s242, %s242
                %s257 = sphi %s239, %s239
              $region59: #{tpu_custom_call.1} parent=55 // loop_header_branch
                %254 = sbr.rel (%p252) target = $region63
              $region60: #{tpu_custom_call.1} parent=55 // loop_body
                %v258 = vld [vmem:[%s256] sm:$0xff]
                %259 = vst [vmem:[%s257] sm:$0xff] %v258
                %v260 = vld [vmem:[%s256 + $0x10] sm:$0xff]
                %261 = vst [vmem:[%s257 + $0x8] sm:$0xff] %v260
              $region61: #{tpu_custom_call.1} parent=55 // loop_footer
                %s255 = sadd.s32 1, %s251
              $region62: #{tpu_custom_call.1} parent=55 // loop_footer_branch
                %250 = sbr.rel target = $region58
              $region63: #{tpu_custom_call.1} parent=55 // loop_exit
                _
            $region56: #{tpu_custom_call.1} parent=47 // pred_fallthru
              _
          $region48: #{tpu_custom_call.1} parent=43 // pred_fallthru
            _
          %278 = vnop
        $region44: #{tpu_custom_call.1} parent=39 // pred_fallthru
          _
      $region40: #{tpu_custom_call.1} parent=5 // pred_fallthru
        _
      %p279 = scmp.le.s32.totalorder 1, %s18
      %p280 = scmp.lt.s32.totalorder %s18, 3
      %p281 = pnand %p279, %p280
      %p282 = pneg %p281
      // Predicated region
      $region79: #{tpu_custom_call.1} parent=5 // pred_check
        _
      $region80: #{tpu_custom_call.1} parent=5 // pred_check_branch
        %284 = sbr.rel (%p281) target = $region82
      $region81: #{tpu_custom_call.1} parent=5 // pred_region
        %s285 = ssub.s32 %s18, 1
        %s286 = sand.u32 %s31, 1
        %s287 = sand.u32 %s31, 1
        %s288 = smul.addr %s287, 16
        %s289 = scalar_lea.vmem [#allocation3], %s288
        // Predicated region
        $region83: #{tpu_custom_call.1} parent=81 // pred_check
          %p290 = pneg %p44
        $region84: #{tpu_custom_call.1} parent=81 // pred_check_branch
          %292 = sbr.rel (%p290) target = $region86
        $region85: #{tpu_custom_call.1} parent=81 // pred_region
          _
        $region86: #{tpu_custom_call.1} parent=81 // pred_fallthru
          _
        %s293 = sand.u32 %s31, 1
        %s294 = sand.u32 %s31, 1
        %s295 = smul.addr %s294, 16
        %s296 = scalar_lea.vmem [#allocation3], %s295
        %p297 = pneg %p44
        %p298 = pneg %p41
        %p299 = pneg %p65
        %p300 = pneg %p62
        %p301 = pneg %p86
        %p302 = pneg %p83
        %p303 = pneg %p107
        %p304 = pneg %p104
        %p305 = pneg %p128
        %p306 = pneg %p125
        %p307 = pneg %p149
        %p308 = pneg %p146
        %p309 = pneg %p170
        %p310 = pneg %p167
        %p311 = pneg %p196
        %p312 = pneg %p193
        %s313 = sand.u32 %s183, 1
        %s314 = scalar_lea.sflag [#allocation5], %s313
        %s315 = sand.u32 %s183, 1
        %s316 = smul.addr %s315, 2
        %s317 = scalar_lea.vmem [#allocation4], %s316
        %s318 = smul.u32 2, %s23
        %s319 = smul.u32 2, %s23
        %v321 = vld [vmem:[%s289] sm:$0xff]
        %v322 = vld [vmem:[%s289 + $0x8] sm:$0xff]
        %v323 = vld [vmem:[%s1] sm:$0xf]
        %v324 = vld [vmem:[%s1 + $0x4] sm:$0xf]
        %v325 = vld [vmem:[%s1 + $0x8] sm:$0xf]
        %v326 = vld [vmem:[%s1 + $0xc] sm:$0xf]
        %v327 = vld [vmem:[%s2] sm:$0xff]
        %v328 = vld [vmem:[%s2 + $0x8] sm:$0xff]
        %v329 = vld [vmem:[%s2 + $0x10] sm:$0xff]
        %v330 = vld [vmem:[%s2 + $0x18] sm:$0xff]
        %332 = vset.pattern.permute.xlu0 0
        %333 = vperm.xlu0 %332, %v327
        %v334 = vpop.permute.xlu0 %333
        %337 = vset.pattern.permute.xlu0 0
        %338 = vperm.xlu0 %337, %v328
        %v339 = vpop.permute.xlu0 %338
        %342 = vset.pattern.permute.xlu0 0
        %343 = vperm.xlu0 %342, %v329
        %v344 = vpop.permute.xlu0 %343
        %347 = vset.pattern.permute.xlu0 0
        %348 = vperm.xlu0 %347, %v330
        %v349 = vpop.permute.xlu0 %348
        %v355 = vunpack.c.l.b16 %v323
        %v356 = vunpack.c.l.b16 %v324
        %v357 = vunpack.c.l.b16 %v325
        %v358 = vunpack.c.l.b16 %v326
        %v359 = vpack.c.b16 %v356, %v355
        %v360 = vpack.c.b16 %v358, %v357
        %v363 = vunpack.c.l.b16 %v321
        %v364 = vunpack.c.h.b16 %v321
        %v365 = vunpack.c.l.b16 %v322
        %v366 = vunpack.c.h.b16 %v322
        %v367 = vpack.c.b16 %v365, %v363
        %v368 = vpack.c.b16 %v366, %v364
        %vm371 = vcmask 130048
        %v373 = vsel %vm371, %v359, 0
        %v376 = vsel %vm371, %v360, 0
        %378 = vmatprep.subr.bf16.mxu0 %v368
        %379 = vmatpush1.bf16.msra.mxu0 %v367
        %380 = vmatprep.subr.bf16.mxu0 0
        %381 = vmatpush1.bf16.msra.mxu0 0
        %382 = vmatprep.subr.bf16.mxu0 0
        %383 = vmatpush1.bf16.msra.mxu0 0
        %384 = vmatprep.subr.bf16.mxu0 0
        %385 = vmatpush1.bf16.msra.mxu0 0
        %386 = vmatprep.subr.bf16.mxu0 0
        %387 = vmatpush1.bf16.msra.mxu0 0
        %388 = vmatprep.subr.bf16.mxu0 0
        %389 = vmatpush1.bf16.msra.mxu0 0
        %390 = vmatprep.subr.bf16.mxu0 0
        %391 = vmatpush1.bf16.msra.mxu0 0
        %392 = vmatprep.subr.bf16.mxu0 0
        %393 = vmatpush1.bf16.msra.mxu0 0
        %394 = vmatprep.subr.bf16.mxu0 0
        %395 = vmatpush1.bf16.msra.mxu0 0
        %396 = vmatprep.subr.bf16.mxu0 0
        %397 = vmatpush1.bf16.msra.mxu0 0
        %398 = vmatprep.subr.bf16.mxu0 0
        %399 = vmatpush1.bf16.msra.mxu0 0
        %400 = vmatprep.subr.bf16.mxu0 0
        %401 = vmatpush1.bf16.msra.mxu0 0
        %402 = vmatprep.subr.bf16.mxu0 0
        %403 = vmatpush1.bf16.msra.mxu0 0
        %404 = vmatprep.subr.bf16.mxu0 0
        %405 = vmatpush1.bf16.msra.mxu0 0
        %406 = vmatprep.subr.bf16.mxu0 0
        %407 = vmatpush1.bf16.msra.mxu0 0
        %408 = vmatprep.subr.bf16.mxu0 0
        %409 = vmatpush1.bf16.msra.mxu0 0
        %410 = vmatprep.mubr.bf16.mxu0 0
        %411 = vmatmul.mubr.bf16.gmra.mrb[0].mxu0 %v373
        %v412 = vpop.f32.mrb[0].mxu0
        %v413 = vadd.f32 %v334, %v412
        %v414 = vpop.f32.mrb[0].mxu0
        %v415 = vadd.f32 %v334, %v414
        %v416 = vpop.f32.mrb[0].mxu0
        %v417 = vadd.f32 %v339, %v416
        %v418 = vpop.f32.mrb[0].mxu0
        %v419 = vadd.f32 %v339, %v418
        %420 = vmatprep.mubr.bf16.mxu0 0
        %421 = vmatmul.mubr.bf16.gmra.mrb[0].mxu0 %v376
        %v422 = vpop.f32.mrb[0].mxu0
        %v423 = vadd.f32 %v344, %v422
        %v424 = vpop.f32.mrb[0].mxu0
        %v425 = vadd.f32 %v344, %v424
        %v426 = vpop.f32.mrb[0].mxu0
        %v427 = vadd.f32 %v349, %v426
        %v428 = vpop.f32.mrb[0].mxu0
        %v429 = vadd.f32 %v349, %v428
        %430 = vdwg.mxu0
        %v431 = vmax.f32 %v413, 0.0
        %v432 = vmax.f32 %v415, 0.0
        %v433 = vmax.f32 %v417, 0.0
        %v434 = vmax.f32 %v419, 0.0
        %v435 = vmax.f32 %v423, 0.0
        %v436 = vmax.f32 %v425, 0.0
        %v437 = vmax.f32 %v427, 0.0
        %v438 = vmax.f32 %v429, 0.0
        %v439 = vld [vmem:[%s3] sm:$0xf]
        %v440 = vld [vmem:[%s3 + $0x4] sm:$0xf]
        %v441 = vpack.c.bf16 %v433, %v431
        %v442 = vpack.c.bf16 %v434, %v432
        %v443 = vpack.c.bf16 %v437, %v435
        %v444 = vpack.c.bf16 %v438, %v436
        %v445 = vld [vmem:[%s4] sm:$0xff]
        %v446 = vld [vmem:[%s4 + $0x8] sm:$0xff]
        %448 = vset.pattern.permute.xlu0 0
        %449 = vperm.xlu0 %448, %v445
        %v450 = vpop.permute.xlu0 %449
        %453 = vset.pattern.permute.xlu0 0
        %454 = vperm.xlu0 %453, %v446
        %v455 = vpop.permute.xlu0 %454
        %v459 = vunpack.c.l.b16 %v439
        %v460 = vunpack.c.l.b16 %v440
        %v461 = vpack.c.b16 %v460, %v459
        %vm462 = vcmask 261120
        %v464 = vsel %vm462, %v461, 0
        %466 = vmatprep.subr.bf16.mxu0 %v442
        %467 = vmatpush1.bf16.msra.mxu0 %v441
        %468 = vmatprep.subr.bf16.mxu0 %v444
        %469 = vmatpush1.bf16.msra.mxu0 %v443
        %470 = vmatprep.subr.bf16.mxu0 0
        %471 = vmatpush1.bf16.msra.mxu0 0
        %472 = vmatprep.subr.bf16.mxu0 0
        %473 = vmatpush1.bf16.msra.mxu0 0
        %474 = vmatprep.subr.bf16.mxu0 0
        %475 = vmatpush1.bf16.msra.mxu0 0
        %476 = vmatprep.subr.bf16.mxu0 0
        %477 = vmatpush1.bf16.msra.mxu0 0
        %478 = vmatprep.subr.bf16.mxu0 0
        %479 = vmatpush1.bf16.msra.mxu0 0
        %480 = vmatprep.subr.bf16.mxu0 0
        %481 = vmatpush1.bf16.msra.mxu0 0
        %482 = vmatprep.subr.bf16.mxu0 0
        %483 = vmatpush1.bf16.msra.mxu0 0
        %484 = vmatprep.subr.bf16.mxu0 0
        %485 = vmatpush1.bf16.msra.mxu0 0
        %486 = vmatprep.subr.bf16.mxu0 0
        %487 = vmatpush1.bf16.msra.mxu0 0
        %488 = vmatprep.subr.bf16.mxu0 0
        %489 = vmatpush1.bf16.msra.mxu0 0
        %490 = vmatprep.subr.bf16.mxu0 0
        %491 = vmatpush1.bf16.msra.mxu0 0
        %492 = vmatprep.subr.bf16.mxu0 0
        %493 = vmatpush1.bf16.msra.mxu0 0
        %494 = vmatprep.subr.bf16.mxu0 0
        %495 = vmatpush1.bf16.msra.mxu0 0
        %496 = vmatprep.subr.bf16.mxu0 0
        %497 = vmatpush1.bf16.msra.mxu0 0
        %498 = vmatprep.mubr.bf16.mxu0 0
        %499 = vmatmul.mubr.bf16.gmra.mrb[0].mxu0 %v464
        %v500 = vpop.f32.mrb[0].mxu0
        %v501 = vadd.f32 %v450, %v500
        %v502 = vpop.f32.mrb[0].mxu0
        %v503 = vadd.f32 %v450, %v502
        %v504 = vpop.f32.mrb[0].mxu0
        %v505 = vadd.f32 %v455, %v504
        %v506 = vpop.f32.mrb[0].mxu0
        %v507 = vadd.f32 %v455, %v506
        %508 = vdwg.mxu0
        %v509 = vmax.f32 %v501, 0.0
        %v510 = vmax.f32 %v503, 0.0
        %v511 = vmax.f32 %v505, 0.0
        %v512 = vmax.f32 %v507, 0.0
        %v513 = vld [vmem:[%s5] sm:$0x1]
        %v514 = vpack.c.bf16 %v511, %v509
        %v515 = vpack.c.bf16 %v512, %v510
        %v516 = vld [vmem:[#allocation2] sm:$0x1]
        %518 = vset.pattern.permute.xlu0 0
        %519 = vperm.xlu0 %518, %v516
        %v520 = vpop.permute.xlu0 %519
        %v522 = vlaneseq
        %v523 = vshrl.u32 %v522, 7
        %v524 = vsub.s32 0, %v523
        %v525 = vrot.slane %v520, %v524
        %v527 = vsel %vm371, %v513, 0
        %529 = vmatprep.subr.bf16.mxu0 %v515
        %530 = vmatpush1.bf16.msra.mxu0 %v514
        %531 = vmatprep.subr.bf16.mxu0 0
        %532 = vmatpush1.bf16.msra.mxu0 0
        %533 = vmatprep.subr.bf16.mxu0 0
        %534 = vmatpush1.bf16.msra.mxu0 0
        %535 = vmatprep.subr.bf16.mxu0 0
        %536 = vmatpush1.bf16.msra.mxu0 0
        %537 = vmatprep.subr.bf16.mxu0 0
        %538 = vmatpush1.bf16.msra.mxu0 0
        %539 = vmatprep.subr.bf16.mxu0 0
        %540 = vmatpush1.bf16.msra.mxu0 0
        %541 = vmatprep.subr.bf16.mxu0 0
        %542 = vmatpush1.bf16.msra.mxu0 0
        %543 = vmatprep.subr.bf16.mxu0 0
        %544 = vmatpush1.bf16.msra.mxu0 0
        %545 = vmatprep.subr.bf16.mxu0 0
        %546 = vmatpush1.bf16.msra.mxu0 0
        %547 = vmatprep.subr.bf16.mxu0 0
        %548 = vmatpush1.bf16.msra.mxu0 0
        %549 = vmatprep.subr.bf16.mxu0 0
        %550 = vmatpush1.bf16.msra.mxu0 0
        %551 = vmatprep.subr.bf16.mxu0 0
        %552 = vmatpush1.bf16.msra.mxu0 0
        %553 = vmatprep.subr.bf16.mxu0 0
        %554 = vmatpush1.bf16.msra.mxu0 0
        %555 = vmatprep.subr.bf16.mxu0 0
        %556 = vmatpush1.bf16.msra.mxu0 0
        %557 = vmatprep.subr.bf16.mxu0 0
        %558 = vmatpush1.bf16.msra.mxu0 0
        %559 = vmatprep.subr.bf16.mxu0 0
        %560 = vmatpush1.bf16.msra.mxu0 0
        %561 = vmatprep.mubr.bf16.mxu0 0
        %562 = vmatmul.mubr.bf16.gmra.mrb[0].mxu0 %v527
        %v563 = vpop.f32.mrb[0].mxu0
        %v564 = vadd.f32 %v525, %v563
        %v565 = vpop.f32.mrb[0].mxu0
        %v566 = vadd.f32 %v525, %v565
        %v567 = vpop.f32.mrb[0].mxu0
        %v568 = vpop.f32.mrb[0].mxu0
        %569 = vdwg.mxu0
        %v572 = vcombine.low %v564, %v566
        %v574 = vunpack.c.l.s4 1966171168
        %v575 = vunpack.c.0.s8 %v574
        %v576 = vlaneseq
        %v577 = vshrl.u32 %v576, 7
        %v578 = vsub.s32 %v575, %v577
        %v579 = vrot.slane %v572, %v578
        %v581 = vunpack.c.l.s4 1966171168
        %v582 = vunpack.c.0.s8 %v581
        %v583 = vlaneseq
        %v584 = vshrl.u32 %v583, 7
        %v585 = vsub.s32 %v582, %v584
        %v586 = vrot.slane %v579, %v585
        %v588 = vlaneseq
        %vm589 = vcmp.ge.s32.totalorder %v588, 0
        %vm590 = vcmp.lt.s32.totalorder %v588, 256
        %vm591 = vmand %vm589, %vm590
        %592 = vst.msk [vmem:[%s317] sm:$0x3] %vm591, %v586
        %s593 = sand.u32 %s183, 1
        %s594 = scalar_lea.sflag [#allocation5], %s593
        %s595 = sand.u32 %s183, 1
        %s596 = smul.addr %s595, 2
        %s597 = scalar_lea.vmem [#allocation4], %s596
        // Predicated region
        $region87: #{tpu_custom_call.1} parent=81 // pred_check
          %p598 = pneg %p193
        $region88: #{tpu_custom_call.1} parent=81 // pred_check_branch
          %600 = sbr.rel (%p598) target = $region90
        $region89: #{tpu_custom_call.1} parent=81 // pred_region
          %s601 = smul.u32 2, %s23
          %s603 = ssub.s32 32, 32
          %604 = vsyncadd %s594, %s603
          %s605 = smul.addr %s601, 16
          %s606 = scalar_lea.hbm %s7, %s605
          %s608 = sshll.u32 %s597, 4
          %s609 = int_to_ptr.vmem [resolvable:$true] %s608
          %611 = dma.vmem_to_hbm [thread:$0]  %s609, 32, %s606, %s594
        $region90: #{tpu_custom_call.1} parent=81 // pred_fallthru
          _
      $region82: #{tpu_custom_call.1} parent=5 // pred_fallthru
        _
      %p612 = scmp.le.s32.totalorder 2, %s18
      // Predicated region
      $region91: #{tpu_custom_call.1} parent=5 // pred_check
        %p613 = pneg %p612
      $region92: #{tpu_custom_call.1} parent=5 // pred_check_branch
        %615 = sbr.rel (%p613) target = $region94
      $region93: #{tpu_custom_call.1} parent=5 // pred_region
        %s616 = ssub.s32 %s18, 2
        // Predicated region
        $region95: #{tpu_custom_call.1} parent=93 // pred_check
          %p617 = pneg %p199
        $region96: #{tpu_custom_call.1} parent=93 // pred_check_branch
          %619 = sbr.rel (%p617) target = $region98
        $region97: #{tpu_custom_call.1} parent=93 // pred_region
          %s620 = sand.u32 %s184, 1
          %s621 = scalar_lea.sflag [#allocation5], %s620
          %s622 = sand.u32 %s184, 1
          %s623 = smul.addr %s622, 2
          %s624 = scalar_lea.vmem [#allocation4], %s623
          %625 = dma.done %s621, 32
        $region98: #{tpu_custom_call.1} parent=93 // pred_fallthru
          _
      $region94: #{tpu_custom_call.1} parent=5 // pred_fallthru
        _
    $region6: #{tpu_custom_call.1} parent=1 // loop_footer
      %s22 = sadd.s32 1, %s18
    $region7: #{tpu_custom_call.1} parent=1 // loop_footer_branch
      %17 = sbr.rel target = $region3
    $region8: #{tpu_custom_call.1} parent=1 // loop_exit
      _
    %626 = vsyncpa [#allocation5], 1
    %s627 = scalar_lea.sflag [#allocation5], 1
    %628 = vsyncpa %s627, 1

</llo_original>
